<compile_context>
chip_gen: v5e
topology: v5e:2x2
jax: 0.10.0
libtpu: 0.0.40
codegen_flags: <defaults>
</compile_context>

<pallas_src>
import jax
import jax.numpy as jnp
from jax.experimental import pallas as pl
from jax.experimental.pallas import tpu as pltpu

HIDDEN_SIZE = 8
INPUT_SIZE = 3
NUM_CLASSES = 4
LANE = 128                 # TPU lane width; the batch tile is a multiple of this.
MAX_BATCH_TILE = 32768     # ~896 KiB of in+out per grid step; amortizes per-step overhead.


def net_kernel(x_ref, w1_ref, b1_ref, w2_ref, b2_ref, o_ref):
    # x_ref: [INPUT_SIZE, TB] (VMEM, batch on lanes)
    # w1_ref [INPUT_SIZE, HIDDEN_SIZE], b1_ref [HIDDEN_SIZE],
    # w2_ref [HIDDEN_SIZE, NUM_CLASSES], b2_ref [NUM_CLASSES]  -- all SMEM scalars
    # o_ref: [NUM_CLASSES, TB] (VMEM)
    x = x_ref[...]

    # ---- Linear(in -> hidden) + tanh: scalar-weight * dense-[1,TB] FMAs on the VPU ----
    h_rows = []
    for j in range(HIDDEN_SIZE):
        acc = x[0:1, :] * w1_ref[0, j]
        for k in range(1, INPUT_SIZE):
            acc = acc + x[k:k + 1, :] * w1_ref[k, j]
        h_rows.append(jnp.tanh(acc + b1_ref[j]))          # tanh -> EUP slot

    # ---- Linear(hidden -> classes): same scalar*vector FMA pattern ----
    logit_rows = []
    for c in range(NUM_CLASSES):
        acc = h_rows[0] * w2_ref[0, c]
        for j in range(1, HIDDEN_SIZE):
            acc = acc + h_rows[j] * w2_ref[j, c]
        logit_rows.append(acc + b2_ref[c])

    # ---- softmax over the NUM_CLASSES rows (pure VPU max/add over 4 vectors; no XLU) ----
    m = logit_rows[0]
    for r in logit_rows[1:]:
        m = jnp.maximum(m, r)
    e_rows = [jnp.exp(r - m) for r in logit_rows]
    denom = e_rows[0]
    for e in e_rows[1:]:
        denom = denom + e
    inv = 1.0 / denom                                     # exact divide: rows sum to 1
    o_ref[...] = jnp.concatenate(e_rows, axis=0) * inv    # single dense [NUM_CLASSES, TB] store


def _round_up(n, m):
    return (n + m - 1) // m * m


def net_forward(x, w1, b1, w2, b2):
    """x: [B, INPUT_SIZE] f32; w1: [in, hid]; b1: [hid]; w2: [hid, C]; b2: [C]."""
    B = x.shape[0]
    B128 = _round_up(max(B, 1), LANE)
    if B128 <= LANE:
        TB = LANE
    elif B128 <= 2 * MAX_BATCH_TILE:
        # Aim for at least 2 grid steps so the "parallel" axis can use v7x's 2 TensorCores.
        TB = _round_up(B128 // 2, LANE)
    else:
        TB = MAX_BATCH_TILE
    B_pad = _round_up(B128, TB)

    # Transposed, batch-on-lane input: only INPUT_SIZE rows get padded/copied (12 B per column).
    xt = jnp.zeros((INPUT_SIZE, B_pad), jnp.float32).at[:, :B].set(x.T)

    out_t = pl.pallas_call(
        net_kernel,
        out_shape=jax.ShapeDtypeStruct((NUM_CLASSES, B_pad), jnp.float32),
        grid=(B_pad // TB,),
        in_specs=[
            pl.BlockSpec((INPUT_SIZE, TB), lambda i: (0, i)),          # x^T blocked over batch lanes
            pl.BlockSpec(memory_space=pltpu.MemorySpace.SMEM),          # w1 as SMEM scalars
            pl.BlockSpec(memory_space=pltpu.MemorySpace.SMEM),          # b1
            pl.BlockSpec(memory_space=pltpu.MemorySpace.SMEM),          # w2
            pl.BlockSpec(memory_space=pltpu.MemorySpace.SMEM),          # b2
        ],
        out_specs=pl.BlockSpec((NUM_CLASSES, TB), lambda i: (0, i)),
        compiler_params=pltpu.CompilerParams(
            dimension_semantics=("parallel",)),                         # shards across v7x dual-TC
    )(xt, w1, b1, w2, b2)

    return out_t[:, :B].T                                               # back to [B, NUM_CLASSES]


def init_params(key):
    """Deterministic init mimicking nn.Linear's U(-1/sqrt(fan_in), 1/sqrt(fan_in))."""
    k1, k2, k3, k4 = jax.random.split(key, 4)
    bound1 = 1.0 / jnp.sqrt(INPUT_SIZE)
    bound2 = 1.0 / jnp.sqrt(HIDDEN_SIZE)
    # Stored directly in [in, out] layout (transpose of PyTorch's [out, in]).
    w1 = jax.random.uniform(k1, (INPUT_SIZE, HIDDEN_SIZE), jnp.float32, -bound1, bound1)
    b1 = jax.random.uniform(k2, (HIDDEN_SIZE,), jnp.float32, -bound1, bound1)
    w2 = jax.random.uniform(k3, (HIDDEN_SIZE, NUM_CLASSES), jnp.float32, -bound2, bound2)
    b2 = jax.random.uniform(k4, (NUM_CLASSES,), jnp.float32, -bound2, bound2)
    return w1, b1, w2, b2


if __name__ == "__main__":
    key = jax.random.PRNGKey(0)
    kx, kp = jax.random.split(key)
    batch = 8
    x = jax.random.normal(kx, (batch, INPUT_SIZE), jnp.float32)
    w1, b1, w2, b2 = init_params(kp)

    out = jax.block_until_ready(net_forward(x, w1, b1, w2, b2))

    # Pure-JAX reference (highest matmul precision so the comparison is apples-to-apples).
    h = jnp.tanh(jnp.dot(x, w1, precision=jax.lax.Precision.HIGHEST) + b1)
    ref = jax.nn.softmax(jnp.dot(h, w2, precision=jax.lax.Precision.HIGHEST) + b2, axis=-1)

    assert out.shape == (batch, NUM_CLASSES)
    assert jnp.allclose(jnp.sum(out, axis=-1), 1.0, atol=1e-5)
    assert jnp.allclose(out, ref, atol=1e-4)
    print("KERNEL_OK")
</pallas_src>

<mosaic_0001>
module attributes {stable_mosaic.version = 11 : i64} {
  func.func @net_kernel(%arg0: i32, %arg1: memref<3x128xf32, #tpu.memory_space<vmem>>, %arg2: memref<3x8xf32, #tpu.memory_space<smem>>, %arg3: memref<8xf32, #tpu.memory_space<smem>>, %arg4: memref<8x4xf32, #tpu.memory_space<smem>>, %arg5: memref<4xf32, #tpu.memory_space<smem>>, %arg6: memref<4x128xf32, #tpu.memory_space<vmem>>) attributes {dimension_semantics = [#tpu.dimension_semantics<parallel>], iteration_bounds = array<i64: 1>, scalar_prefetch = 0 : i64, scratch_operands = 0 : i64, tpu.core_type = #tpu.core_type<tc>, window_params = [{transform_indices = @transform_0, window_bounds = array<i64: 3, 128>}, {transform_indices = @transform_1, window_bounds = array<i64: 3, 8>}, {transform_indices = @transform_2, window_bounds = array<i64: 8>}, {transform_indices = @transform_3, window_bounds = array<i64: 8, 4>}, {transform_indices = @transform_4, window_bounds = array<i64: 4>}, {transform_indices = @transform_5, window_bounds = array<i64: 4, 128>}]} {
    %c0 = arith.constant 0 : index
    %c0_0 = arith.constant 0 : index
    %0 = vector.load %arg1[%c0, %c0_0] : memref<3x128xf32, #tpu.memory_space<vmem>>, vector<3x128xf32>
    %1 = vector.extract_strided_slice %0 {offsets = [0, 0], sizes = [1, 128], strides = [1, 1]} : vector<3x128xf32> to vector<1x128xf32>
    %c0_1 = arith.constant 0 : index
    %c0_2 = arith.constant 0 : index
    %2 = memref.load %arg2[%c0_1, %c0_2] : memref<3x8xf32, #tpu.memory_space<smem>>
    %3 = vector.broadcast %2 : f32 to vector<1x128xf32>
    %4 = arith.mulf %1, %3 : vector<1x128xf32>
    %5 = vector.extract_strided_slice %0 {offsets = [1, 0], sizes = [1, 128], strides = [1, 1]} : vector<3x128xf32> to vector<1x128xf32>
    %c1 = arith.constant 1 : index
    %c0_3 = arith.constant 0 : index
    %6 = memref.load %arg2[%c1, %c0_3] : memref<3x8xf32, #tpu.memory_space<smem>>
    %7 = vector.broadcast %6 : f32 to vector<1x128xf32>
    %8 = arith.mulf %5, %7 : vector<1x128xf32>
    %9 = arith.addf %4, %8 : vector<1x128xf32>
    %10 = vector.extract_strided_slice %0 {offsets = [2, 0], sizes = [1, 128], strides = [1, 1]} : vector<3x128xf32> to vector<1x128xf32>
    %c2 = arith.constant 2 : index
    %c0_4 = arith.constant 0 : index
    %11 = memref.load %arg2[%c2, %c0_4] : memref<3x8xf32, #tpu.memory_space<smem>>
    %12 = vector.broadcast %11 : f32 to vector<1x128xf32>
    %13 = arith.mulf %10, %12 : vector<1x128xf32>
    %14 = arith.addf %9, %13 : vector<1x128xf32>
    %c0_5 = arith.constant 0 : index
    %15 = memref.load %arg3[%c0_5] : memref<8xf32, #tpu.memory_space<smem>>
    %16 = vector.broadcast %15 : f32 to vector<1x128xf32>
    %17 = arith.addf %14, %16 : vector<1x128xf32>
    %18 = math.tanh %17 : vector<1x128xf32>
    %19 = vector.extract_strided_slice %0 {offsets = [0, 0], sizes = [1, 128], strides = [1, 1]} : vector<3x128xf32> to vector<1x128xf32>
    %c0_6 = arith.constant 0 : index
    %c1_7 = arith.constant 1 : index
    %20 = memref.load %arg2[%c0_6, %c1_7] : memref<3x8xf32, #tpu.memory_space<smem>>
    %21 = vector.broadcast %20 : f32 to vector<1x128xf32>
    %22 = arith.mulf %19, %21 : vector<1x128xf32>
    %23 = vector.extract_strided_slice %0 {offsets = [1, 0], sizes = [1, 128], strides = [1, 1]} : vector<3x128xf32> to vector<1x128xf32>
    %c1_8 = arith.constant 1 : index
    %c1_9 = arith.constant 1 : index
    %24 = memref.load %arg2[%c1_8, %c1_9] : memref<3x8xf32, #tpu.memory_space<smem>>
    %25 = vector.broadcast %24 : f32 to vector<1x128xf32>
    %26 = arith.mulf %23, %25 : vector<1x128xf32>
    %27 = arith.addf %22, %26 : vector<1x128xf32>
    %28 = vector.extract_strided_slice %0 {offsets = [2, 0], sizes = [1, 128], strides = [1, 1]} : vector<3x128xf32> to vector<1x128xf32>
    %c2_10 = arith.constant 2 : index
    %c1_11 = arith.constant 1 : index
    %29 = memref.load %arg2[%c2_10, %c1_11] : memref<3x8xf32, #tpu.memory_space<smem>>
    %30 = vector.broadcast %29 : f32 to vector<1x128xf32>
    %31 = arith.mulf %28, %30 : vector<1x128xf32>
    %32 = arith.addf %27, %31 : vector<1x128xf32>
    %c1_12 = arith.constant 1 : index
    %33 = memref.load %arg3[%c1_12] : memref<8xf32, #tpu.memory_space<smem>>
    %34 = vector.broadcast %33 : f32 to vector<1x128xf32>
    %35 = arith.addf %32, %34 : vector<1x128xf32>
    %36 = math.tanh %35 : vector<1x128xf32>
    %37 = vector.extract_strided_slice %0 {offsets = [0, 0], sizes = [1, 128], strides = [1, 1]} : vector<3x128xf32> to vector<1x128xf32>
    %c0_13 = arith.constant 0 : index
    %c2_14 = arith.constant 2 : index
    %38 = memref.load %arg2[%c0_13, %c2_14] : memref<3x8xf32, #tpu.memory_space<smem>>
    %39 = vector.broadcast %38 : f32 to vector<1x128xf32>
    %40 = arith.mulf %37, %39 : vector<1x128xf32>
    %41 = vector.extract_strided_slice %0 {offsets = [1, 0], sizes = [1, 128], strides = [1, 1]} : vector<3x128xf32> to vector<1x128xf32>
    %c1_15 = arith.constant 1 : index
    %c2_16 = arith.constant 2 : index
    %42 = memref.load %arg2[%c1_15, %c2_16] : memref<3x8xf32, #tpu.memory_space<smem>>
    %43 = vector.broadcast %42 : f32 to vector<1x128xf32>
    %44 = arith.mulf %41, %43 : vector<1x128xf32>
    %45 = arith.addf %40, %44 : vector<1x128xf32>
    %46 = vector.extract_strided_slice %0 {offsets = [2, 0], sizes = [1, 128], strides = [1, 1]} : vector<3x128xf32> to vector<1x128xf32>
    %c2_17 = arith.constant 2 : index
    %c2_18 = arith.constant 2 : index
    %47 = memref.load %arg2[%c2_17, %c2_18] : memref<3x8xf32, #tpu.memory_space<smem>>
    %48 = vector.broadcast %47 : f32 to vector<1x128xf32>
    %49 = arith.mulf %46, %48 : vector<1x128xf32>
    %50 = arith.addf %45, %49 : vector<1x128xf32>
    %c2_19 = arith.constant 2 : index
    %51 = memref.load %arg3[%c2_19] : memref<8xf32, #tpu.memory_space<smem>>
    %52 = vector.broadcast %51 : f32 to vector<1x128xf32>
    %53 = arith.addf %50, %52 : vector<1x128xf32>
    %54 = math.tanh %53 : vector<1x128xf32>
    %55 = vector.extract_strided_slice %0 {offsets = [0, 0], sizes = [1, 128], strides = [1, 1]} : vector<3x128xf32> to vector<1x128xf32>
    %c0_20 = arith.constant 0 : index
    %c3 = arith.constant 3 : index
    %56 = memref.load %arg2[%c0_20, %c3] : memref<3x8xf32, #tpu.memory_space<smem>>
    %57 = vector.broadcast %56 : f32 to vector<1x128xf32>
    %58 = arith.mulf %55, %57 : vector<1x128xf32>
    %59 = vector.extract_strided_slice %0 {offsets = [1, 0], sizes = [1, 128], strides = [1, 1]} : vector<3x128xf32> to vector<1x128xf32>
    %c1_21 = arith.constant 1 : index
    %c3_22 = arith.constant 3 : index
    %60 = memref.load %arg2[%c1_21, %c3_22] : memref<3x8xf32, #tpu.memory_space<smem>>
    %61 = vector.broadcast %60 : f32 to vector<1x128xf32>
    %62 = arith.mulf %59, %61 : vector<1x128xf32>
    %63 = arith.addf %58, %62 : vector<1x128xf32>
    %64 = vector.extract_strided_slice %0 {offsets = [2, 0], sizes = [1, 128], strides = [1, 1]} : vector<3x128xf32> to vector<1x128xf32>
    %c2_23 = arith.constant 2 : index
    %c3_24 = arith.constant 3 : index
    %65 = memref.load %arg2[%c2_23, %c3_24] : memref<3x8xf32, #tpu.memory_space<smem>>
    %66 = vector.broadcast %65 : f32 to vector<1x128xf32>
    %67 = arith.mulf %64, %66 : vector<1x128xf32>
    %68 = arith.addf %63, %67 : vector<1x128xf32>
    %c3_25 = arith.constant 3 : index
    %69 = memref.load %arg3[%c3_25] : memref<8xf32, #tpu.memory_space<smem>>
    %70 = vector.broadcast %69 : f32 to vector<1x128xf32>
    %71 = arith.addf %68, %70 : vector<1x128xf32>
    %72 = math.tanh %71 : vector<1x128xf32>
    %73 = vector.extract_strided_slice %0 {offsets = [0, 0], sizes = [1, 128], strides = [1, 1]} : vector<3x128xf32> to vector<1x128xf32>
    %c0_26 = arith.constant 0 : index
    %c4 = arith.constant 4 : index
    %74 = memref.load %arg2[%c0_26, %c4] : memref<3x8xf32, #tpu.memory_space<smem>>
    %75 = vector.broadcast %74 : f32 to vector<1x128xf32>
    %76 = arith.mulf %73, %75 : vector<1x128xf32>
    %77 = vector.extract_strided_slice %0 {offsets = [1, 0], sizes = [1, 128], strides = [1, 1]} : vector<3x128xf32> to vector<1x128xf32>
    %c1_27 = arith.constant 1 : index
    %c4_28 = arith.constant 4 : index
    %78 = memref.load %arg2[%c1_27, %c4_28] : memref<3x8xf32, #tpu.memory_space<smem>>
    %79 = vector.broadcast %78 : f32 to vector<1x128xf32>
    %80 = arith.mulf %77, %79 : vector<1x128xf32>
    %81 = arith.addf %76, %80 : vector<1x128xf32>
    %82 = vector.extract_strided_slice %0 {offsets = [2, 0], sizes = [1, 128], strides = [1, 1]} : vector<3x128xf32> to vector<1x128xf32>
    %c2_29 = arith.constant 2 : index
    %c4_30 = arith.constant 4 : index
    %83 = memref.load %arg2[%c2_29, %c4_30] : memref<3x8xf32, #tpu.memory_space<smem>>
    %84 = vector.broadcast %83 : f32 to vector<1x128xf32>
    %85 = arith.mulf %82, %84 : vector<1x128xf32>
    %86 = arith.addf %81, %85 : vector<1x128xf32>
    %c4_31 = arith.constant 4 : index
    %87 = memref.load %arg3[%c4_31] : memref<8xf32, #tpu.memory_space<smem>>
    %88 = vector.broadcast %87 : f32 to vector<1x128xf32>
    %89 = arith.addf %86, %88 : vector<1x128xf32>
    %90 = math.tanh %89 : vector<1x128xf32>
    %91 = vector.extract_strided_slice %0 {offsets = [0, 0], sizes = [1, 128], strides = [1, 1]} : vector<3x128xf32> to vector<1x128xf32>
    %c0_32 = arith.constant 0 : index
    %c5 = arith.constant 5 : index
    %92 = memref.load %arg2[%c0_32, %c5] : memref<3x8xf32, #tpu.memory_space<smem>>
    %93 = vector.broadcast %92 : f32 to vector<1x128xf32>
    %94 = arith.mulf %91, %93 : vector<1x128xf32>
    %95 = vector.extract_strided_slice %0 {offsets = [1, 0], sizes = [1, 128], strides = [1, 1]} : vector<3x128xf32> to vector<1x128xf32>
    %c1_33 = arith.constant 1 : index
    %c5_34 = arith.constant 5 : index
    %96 = memref.load %arg2[%c1_33, %c5_34] : memref<3x8xf32, #tpu.memory_space<smem>>
    %97 = vector.broadcast %96 : f32 to vector<1x128xf32>
    %98 = arith.mulf %95, %97 : vector<1x128xf32>
    %99 = arith.addf %94, %98 : vector<1x128xf32>
    %100 = vector.extract_strided_slice %0 {offsets = [2, 0], sizes = [1, 128], strides = [1, 1]} : vector<3x128xf32> to vector<1x128xf32>
    %c2_35 = arith.constant 2 : index
    %c5_36 = arith.constant 5 : index
    %101 = memref.load %arg2[%c2_35, %c5_36] : memref<3x8xf32, #tpu.memory_space<smem>>
    %102 = vector.broadcast %101 : f32 to vector<1x128xf32>
    %103 = arith.mulf %100, %102 : vector<1x128xf32>
    %104 = arith.addf %99, %103 : vector<1x128xf32>
    %c5_37 = arith.constant 5 : index
    %105 = memref.load %arg3[%c5_37] : memref<8xf32, #tpu.memory_space<smem>>
    %106 = vector.broadcast %105 : f32 to vector<1x128xf32>
    %107 = arith.addf %104, %106 : vector<1x128xf32>
    %108 = math.tanh %107 : vector<1x128xf32>
    %109 = vector.extract_strided_slice %0 {offsets = [0, 0], sizes = [1, 128], strides = [1, 1]} : vector<3x128xf32> to vector<1x128xf32>
    %c0_38 = arith.constant 0 : index
    %c6 = arith.constant 6 : index
    %110 = memref.load %arg2[%c0_38, %c6] : memref<3x8xf32, #tpu.memory_space<smem>>
    %111 = vector.broadcast %110 : f32 to vector<1x128xf32>
    %112 = arith.mulf %109, %111 : vector<1x128xf32>
    %113 = vector.extract_strided_slice %0 {offsets = [1, 0], sizes = [1, 128], strides = [1, 1]} : vector<3x128xf32> to vector<1x128xf32>
    %c1_39 = arith.constant 1 : index
    %c6_40 = arith.constant 6 : index
    %114 = memref.load %arg2[%c1_39, %c6_40] : memref<3x8xf32, #tpu.memory_space<smem>>
    %115 = vector.broadcast %114 : f32 to vector<1x128xf32>
    %116 = arith.mulf %113, %115 : vector<1x128xf32>
    %117 = arith.addf %112, %116 : vector<1x128xf32>
    %118 = vector.extract_strided_slice %0 {offsets = [2, 0], sizes = [1, 128], strides = [1, 1]} : vector<3x128xf32> to vector<1x128xf32>
    %c2_41 = arith.constant 2 : index
    %c6_42 = arith.constant 6 : index
    %119 = memref.load %arg2[%c2_41, %c6_42] : memref<3x8xf32, #tpu.memory_space<smem>>
    %120 = vector.broadcast %119 : f32 to vector<1x128xf32>
    %121 = arith.mulf %118, %120 : vector<1x128xf32>
    %122 = arith.addf %117, %121 : vector<1x128xf32>
    %c6_43 = arith.constant 6 : index
    %123 = memref.load %arg3[%c6_43] : memref<8xf32, #tpu.memory_space<smem>>
    %124 = vector.broadcast %123 : f32 to vector<1x128xf32>
    %125 = arith.addf %122, %124 : vector<1x128xf32>
    %126 = math.tanh %125 : vector<1x128xf32>
    %127 = vector.extract_strided_slice %0 {offsets = [0, 0], sizes = [1, 128], strides = [1, 1]} : vector<3x128xf32> to vector<1x128xf32>
    %c0_44 = arith.constant 0 : index
    %c7 = arith.constant 7 : index
    %128 = memref.load %arg2[%c0_44, %c7] : memref<3x8xf32, #tpu.memory_space<smem>>
    %129 = vector.broadcast %128 : f32 to vector<1x128xf32>
    %130 = arith.mulf %127, %129 : vector<1x128xf32>
    %131 = vector.extract_strided_slice %0 {offsets = [1, 0], sizes = [1, 128], strides = [1, 1]} : vector<3x128xf32> to vector<1x128xf32>
    %c1_45 = arith.constant 1 : index
    %c7_46 = arith.constant 7 : index
    %132 = memref.load %arg2[%c1_45, %c7_46] : memref<3x8xf32, #tpu.memory_space<smem>>
    %133 = vector.broadcast %132 : f32 to vector<1x128xf32>
    %134 = arith.mulf %131, %133 : vector<1x128xf32>
    %135 = arith.addf %130, %134 : vector<1x128xf32>
    %136 = vector.extract_strided_slice %0 {offsets = [2, 0], sizes = [1, 128], strides = [1, 1]} : vector<3x128xf32> to vector<1x128xf32>
    %c2_47 = arith.constant 2 : index
    %c7_48 = arith.constant 7 : index
    %137 = memref.load %arg2[%c2_47, %c7_48] : memref<3x8xf32, #tpu.memory_space<smem>>
    %138 = vector.broadcast %137 : f32 to vector<1x128xf32>
    %139 = arith.mulf %136, %138 : vector<1x128xf32>
    %140 = arith.addf %135, %139 : vector<1x128xf32>
    %c7_49 = arith.constant 7 : index
    %141 = memref.load %arg3[%c7_49] : memref<8xf32, #tpu.memory_space<smem>>
    %142 = vector.broadcast %141 : f32 to vector<1x128xf32>
    %143 = arith.addf %140, %142 : vector<1x128xf32>
    %144 = math.tanh %143 : vector<1x128xf32>
    %c0_50 = arith.constant 0 : index
    %c0_51 = arith.constant 0 : index
    %145 = memref.load %arg4[%c0_50, %c0_51] : memref<8x4xf32, #tpu.memory_space<smem>>
    %146 = vector.broadcast %145 : f32 to vector<1x128xf32>
    %147 = arith.mulf %18, %146 : vector<1x128xf32>
    %c1_52 = arith.constant 1 : index
    %c0_53 = arith.constant 0 : index
    %148 = memref.load %arg4[%c1_52, %c0_53] : memref<8x4xf32, #tpu.memory_space<smem>>
    %149 = vector.broadcast %148 : f32 to vector<1x128xf32>
    %150 = arith.mulf %36, %149 : vector<1x128xf32>
    %151 = arith.addf %147, %150 : vector<1x128xf32>
    %c2_54 = arith.constant 2 : index
    %c0_55 = arith.constant 0 : index
    %152 = memref.load %arg4[%c2_54, %c0_55] : memref<8x4xf32, #tpu.memory_space<smem>>
    %153 = vector.broadcast %152 : f32 to vector<1x128xf32>
    %154 = arith.mulf %54, %153 : vector<1x128xf32>
    %155 = arith.addf %151, %154 : vector<1x128xf32>
    %c3_56 = arith.constant 3 : index
    %c0_57 = arith.constant 0 : index
    %156 = memref.load %arg4[%c3_56, %c0_57] : memref<8x4xf32, #tpu.memory_space<smem>>
    %157 = vector.broadcast %156 : f32 to vector<1x128xf32>
    %158 = arith.mulf %72, %157 : vector<1x128xf32>
    %159 = arith.addf %155, %158 : vector<1x128xf32>
    %c4_58 = arith.constant 4 : index
    %c0_59 = arith.constant 0 : index
    %160 = memref.load %arg4[%c4_58, %c0_59] : memref<8x4xf32, #tpu.memory_space<smem>>
    %161 = vector.broadcast %160 : f32 to vector<1x128xf32>
    %162 = arith.mulf %90, %161 : vector<1x128xf32>
    %163 = arith.addf %159, %162 : vector<1x128xf32>
    %c5_60 = arith.constant 5 : index
    %c0_61 = arith.constant 0 : index
    %164 = memref.load %arg4[%c5_60, %c0_61] : memref<8x4xf32, #tpu.memory_space<smem>>
    %165 = vector.broadcast %164 : f32 to vector<1x128xf32>
    %166 = arith.mulf %108, %165 : vector<1x128xf32>
    %167 = arith.addf %163, %166 : vector<1x128xf32>
    %c6_62 = arith.constant 6 : index
    %c0_63 = arith.constant 0 : index
    %168 = memref.load %arg4[%c6_62, %c0_63] : memref<8x4xf32, #tpu.memory_space<smem>>
    %169 = vector.broadcast %168 : f32 to vector<1x128xf32>
    %170 = arith.mulf %126, %169 : vector<1x128xf32>
    %171 = arith.addf %167, %170 : vector<1x128xf32>
    %c7_64 = arith.constant 7 : index
    %c0_65 = arith.constant 0 : index
    %172 = memref.load %arg4[%c7_64, %c0_65] : memref<8x4xf32, #tpu.memory_space<smem>>
    %173 = vector.broadcast %172 : f32 to vector<1x128xf32>
    %174 = arith.mulf %144, %173 : vector<1x128xf32>
    %175 = arith.addf %171, %174 : vector<1x128xf32>
    %c0_66 = arith.constant 0 : index
    %176 = memref.load %arg5[%c0_66] : memref<4xf32, #tpu.memory_space<smem>>
    %177 = vector.broadcast %176 : f32 to vector<1x128xf32>
    %178 = arith.addf %175, %177 : vector<1x128xf32>
    %c0_67 = arith.constant 0 : index
    %c1_68 = arith.constant 1 : index
    %179 = memref.load %arg4[%c0_67, %c1_68] : memref<8x4xf32, #tpu.memory_space<smem>>
    %180 = vector.broadcast %179 : f32 to vector<1x128xf32>
    %181 = arith.mulf %18, %180 : vector<1x128xf32>
    %c1_69 = arith.constant 1 : index
    %c1_70 = arith.constant 1 : index
    %182 = memref.load %arg4[%c1_69, %c1_70] : memref<8x4xf32, #tpu.memory_space<smem>>
    %183 = vector.broadcast %182 : f32 to vector<1x128xf32>
    %184 = arith.mulf %36, %183 : vector<1x128xf32>
    %185 = arith.addf %181, %184 : vector<1x128xf32>
    %c2_71 = arith.constant 2 : index
    %c1_72 = arith.constant 1 : index
    %186 = memref.load %arg4[%c2_71, %c1_72] : memref<8x4xf32, #tpu.memory_space<smem>>
    %187 = vector.broadcast %186 : f32 to vector<1x128xf32>
    %188 = arith.mulf %54, %187 : vector<1x128xf32>
    %189 = arith.addf %185, %188 : vector<1x128xf32>
    %c3_73 = arith.constant 3 : index
    %c1_74 = arith.constant 1 : index
    %190 = memref.load %arg4[%c3_73, %c1_74] : memref<8x4xf32, #tpu.memory_space<smem>>
    %191 = vector.broadcast %190 : f32 to vector<1x128xf32>
    %192 = arith.mulf %72, %191 : vector<1x128xf32>
    %193 = arith.addf %189, %192 : vector<1x128xf32>
    %c4_75 = arith.constant 4 : index
    %c1_76 = arith.constant 1 : index
    %194 = memref.load %arg4[%c4_75, %c1_76] : memref<8x4xf32, #tpu.memory_space<smem>>
    %195 = vector.broadcast %194 : f32 to vector<1x128xf32>
    %196 = arith.mulf %90, %195 : vector<1x128xf32>
    %197 = arith.addf %193, %196 : vector<1x128xf32>
    %c5_77 = arith.constant 5 : index
    %c1_78 = arith.constant 1 : index
    %198 = memref.load %arg4[%c5_77, %c1_78] : memref<8x4xf32, #tpu.memory_space<smem>>
    %199 = vector.broadcast %198 : f32 to vector<1x128xf32>
    %200 = arith.mulf %108, %199 : vector<1x128xf32>
    %201 = arith.addf %197, %200 : vector<1x128xf32>
    %c6_79 = arith.constant 6 : index
    %c1_80 = arith.constant 1 : index
    %202 = memref.load %arg4[%c6_79, %c1_80] : memref<8x4xf32, #tpu.memory_space<smem>>
    %203 = vector.broadcast %202 : f32 to vector<1x128xf32>
    %204 = arith.mulf %126, %203 : vector<1x128xf32>
    %205 = arith.addf %201, %204 : vector<1x128xf32>
    %c7_81 = arith.constant 7 : index
    %c1_82 = arith.constant 1 : index
    %206 = memref.load %arg4[%c7_81, %c1_82] : memref<8x4xf32, #tpu.memory_space<smem>>
    %207 = vector.broadcast %206 : f32 to vector<1x128xf32>
    %208 = arith.mulf %144, %207 : vector<1x128xf32>
    %209 = arith.addf %205, %208 : vector<1x128xf32>
    %c1_83 = arith.constant 1 : index
    %210 = memref.load %arg5[%c1_83] : memref<4xf32, #tpu.memory_space<smem>>
    %211 = vector.broadcast %210 : f32 to vector<1x128xf32>
    %212 = arith.addf %209, %211 : vector<1x128xf32>
    %c0_84 = arith.constant 0 : index
    %c2_85 = arith.constant 2 : index
    %213 = memref.load %arg4[%c0_84, %c2_85] : memref<8x4xf32, #tpu.memory_space<smem>>
    %214 = vector.broadcast %213 : f32 to vector<1x128xf32>
    %215 = arith.mulf %18, %214 : vector<1x128xf32>
    %c1_86 = arith.constant 1 : index
    %c2_87 = arith.constant 2 : index
    %216 = memref.load %arg4[%c1_86, %c2_87] : memref<8x4xf32, #tpu.memory_space<smem>>
    %217 = vector.broadcast %216 : f32 to vector<1x128xf32>
    %218 = arith.mulf %36, %217 : vector<1x128xf32>
    %219 = arith.addf %215, %218 : vector<1x128xf32>
    %c2_88 = arith.constant 2 : index
    %c2_89 = arith.constant 2 : index
    %220 = memref.load %arg4[%c2_88, %c2_89] : memref<8x4xf32, #tpu.memory_space<smem>>
    %221 = vector.broadcast %220 : f32 to vector<1x128xf32>
    %222 = arith.mulf %54, %221 : vector<1x128xf32>
    %223 = arith.addf %219, %222 : vector<1x128xf32>
    %c3_90 = arith.constant 3 : index
    %c2_91 = arith.constant 2 : index
    %224 = memref.load %arg4[%c3_90, %c2_91] : memref<8x4xf32, #tpu.memory_space<smem>>
    %225 = vector.broadcast %224 : f32 to vector<1x128xf32>
    %226 = arith.mulf %72, %225 : vector<1x128xf32>
    %227 = arith.addf %223, %226 : vector<1x128xf32>
    %c4_92 = arith.constant 4 : index
    %c2_93 = arith.constant 2 : index
    %228 = memref.load %arg4[%c4_92, %c2_93] : memref<8x4xf32, #tpu.memory_space<smem>>
    %229 = vector.broadcast %228 : f32 to vector<1x128xf32>
    %230 = arith.mulf %90, %229 : vector<1x128xf32>
    %231 = arith.addf %227, %230 : vector<1x128xf32>
    %c5_94 = arith.constant 5 : index
    %c2_95 = arith.constant 2 : index
    %232 = memref.load %arg4[%c5_94, %c2_95] : memref<8x4xf32, #tpu.memory_space<smem>>
    %233 = vector.broadcast %232 : f32 to vector<1x128xf32>
    %234 = arith.mulf %108, %233 : vector<1x128xf32>
    %235 = arith.addf %231, %234 : vector<1x128xf32>
    %c6_96 = arith.constant 6 : index
    %c2_97 = arith.constant 2 : index
    %236 = memref.load %arg4[%c6_96, %c2_97] : memref<8x4xf32, #tpu.memory_space<smem>>
    %237 = vector.broadcast %236 : f32 to vector<1x128xf32>
    %238 = arith.mulf %126, %237 : vector<1x128xf32>
    %239 = arith.addf %235, %238 : vector<1x128xf32>
    %c7_98 = arith.constant 7 : index
    %c2_99 = arith.constant 2 : index
    %240 = memref.load %arg4[%c7_98, %c2_99] : memref<8x4xf32, #tpu.memory_space<smem>>
    %241 = vector.broadcast %240 : f32 to vector<1x128xf32>
    %242 = arith.mulf %144, %241 : vector<1x128xf32>
    %243 = arith.addf %239, %242 : vector<1x128xf32>
    %c2_100 = arith.constant 2 : index
    %244 = memref.load %arg5[%c2_100] : memref<4xf32, #tpu.memory_space<smem>>
    %245 = vector.broadcast %244 : f32 to vector<1x128xf32>
    %246 = arith.addf %243, %245 : vector<1x128xf32>
    %c0_101 = arith.constant 0 : index
    %c3_102 = arith.constant 3 : index
    %247 = memref.load %arg4[%c0_101, %c3_102] : memref<8x4xf32, #tpu.memory_space<smem>>
    %248 = vector.broadcast %247 : f32 to vector<1x128xf32>
    %249 = arith.mulf %18, %248 : vector<1x128xf32>
    %c1_103 = arith.constant 1 : index
    %c3_104 = arith.constant 3 : index
    %250 = memref.load %arg4[%c1_103, %c3_104] : memref<8x4xf32, #tpu.memory_space<smem>>
    %251 = vector.broadcast %250 : f32 to vector<1x128xf32>
    %252 = arith.mulf %36, %251 : vector<1x128xf32>
    %253 = arith.addf %249, %252 : vector<1x128xf32>
    %c2_105 = arith.constant 2 : index
    %c3_106 = arith.constant 3 : index
    %254 = memref.load %arg4[%c2_105, %c3_106] : memref<8x4xf32, #tpu.memory_space<smem>>
    %255 = vector.broadcast %254 : f32 to vector<1x128xf32>
    %256 = arith.mulf %54, %255 : vector<1x128xf32>
    %257 = arith.addf %253, %256 : vector<1x128xf32>
    %c3_107 = arith.constant 3 : index
    %c3_108 = arith.constant 3 : index
    %258 = memref.load %arg4[%c3_107, %c3_108] : memref<8x4xf32, #tpu.memory_space<smem>>
    %259 = vector.broadcast %258 : f32 to vector<1x128xf32>
    %260 = arith.mulf %72, %259 : vector<1x128xf32>
    %261 = arith.addf %257, %260 : vector<1x128xf32>
    %c4_109 = arith.constant 4 : index
    %c3_110 = arith.constant 3 : index
    %262 = memref.load %arg4[%c4_109, %c3_110] : memref<8x4xf32, #tpu.memory_space<smem>>
    %263 = vector.broadcast %262 : f32 to vector<1x128xf32>
    %264 = arith.mulf %90, %263 : vector<1x128xf32>
    %265 = arith.addf %261, %264 : vector<1x128xf32>
    %c5_111 = arith.constant 5 : index
    %c3_112 = arith.constant 3 : index
    %266 = memref.load %arg4[%c5_111, %c3_112] : memref<8x4xf32, #tpu.memory_space<smem>>
    %267 = vector.broadcast %266 : f32 to vector<1x128xf32>
    %268 = arith.mulf %108, %267 : vector<1x128xf32>
    %269 = arith.addf %265, %268 : vector<1x128xf32>
    %c6_113 = arith.constant 6 : index
    %c3_114 = arith.constant 3 : index
    %270 = memref.load %arg4[%c6_113, %c3_114] : memref<8x4xf32, #tpu.memory_space<smem>>
    %271 = vector.broadcast %270 : f32 to vector<1x128xf32>
    %272 = arith.mulf %126, %271 : vector<1x128xf32>
    %273 = arith.addf %269, %272 : vector<1x128xf32>
    %c7_115 = arith.constant 7 : index
    %c3_116 = arith.constant 3 : index
    %274 = memref.load %arg4[%c7_115, %c3_116] : memref<8x4xf32, #tpu.memory_space<smem>>
    %275 = vector.broadcast %274 : f32 to vector<1x128xf32>
    %276 = arith.mulf %144, %275 : vector<1x128xf32>
    %277 = arith.addf %273, %276 : vector<1x128xf32>
    %c3_117 = arith.constant 3 : index
    %278 = memref.load %arg5[%c3_117] : memref<4xf32, #tpu.memory_space<smem>>
    %279 = vector.broadcast %278 : f32 to vector<1x128xf32>
    %280 = arith.addf %277, %279 : vector<1x128xf32>
    %281 = arith.maximumf %178, %212 : vector<1x128xf32>
    %282 = arith.maximumf %281, %246 : vector<1x128xf32>
    %283 = arith.maximumf %282, %280 : vector<1x128xf32>
    %284 = arith.subf %178, %283 : vector<1x128xf32>
    %285 = math.exp %284 : vector<1x128xf32>
    %286 = arith.subf %212, %283 : vector<1x128xf32>
    %287 = math.exp %286 : vector<1x128xf32>
    %288 = arith.subf %246, %283 : vector<1x128xf32>
    %289 = math.exp %288 : vector<1x128xf32>
    %290 = arith.subf %280, %283 : vector<1x128xf32>
    %291 = math.exp %290 : vector<1x128xf32>
    %292 = arith.addf %285, %287 : vector<1x128xf32>
    %293 = arith.addf %292, %289 : vector<1x128xf32>
    %294 = arith.addf %293, %291 : vector<1x128xf32>
    %cst = arith.constant 1.000000e+00 : f32
    %295 = vector.broadcast %cst : f32 to vector<1x128xf32>
    %296 = arith.divf %295, %294 : vector<1x128xf32>
    %297 = tpu.concatenate %285, %287, %289, %291 in 0 : vector<1x128xf32>, vector<1x128xf32>, vector<1x128xf32>, vector<1x128xf32> -> vector<4x128xf32>
    %298 = vector.broadcast %296 : vector<1x128xf32> to vector<4x128xf32>
    %299 = arith.mulf %297, %298 : vector<4x128xf32>
    %c0_118 = arith.constant 0 : index
    %c0_119 = arith.constant 0 : index
    %300 = vector.load %arg6[%c0_118, %c0_119] : memref<4x128xf32, #tpu.memory_space<vmem>>, vector<4x128xf32>
    tpu.vector_store %arg6[%c0_118, %c0_119], %299 {strides = array<i32>} : memref<4x128xf32, #tpu.memory_space<vmem>>, vector<4x128xf32>,
    return
  }
  func.func @transform_0(%arg0: i32) -> (i32, i32) {
    %c0_i32 = arith.constant 0 : i32
    %c0_i32_0 = arith.constant 0 : i32
    return %c0_i32, %arg0 : i32, i32
  }
  func.func @transform_1(%arg0: i32) -> (i32, i32) {
    %c0_i32 = arith.constant 0 : i32
    %c0_i32_0 = arith.constant 0 : i32
    %c0_i32_1 = arith.constant 0 : i32
    return %c0_i32, %c0_i32_0 : i32, i32
  }
  func.func @transform_2(%arg0: i32) -> i32 {
    %c0_i32 = arith.constant 0 : i32
    %c0_i32_0 = arith.constant 0 : i32
    return %c0_i32 : i32
  }
  func.func @transform_3(%arg0: i32) -> (i32, i32) {
    %c0_i32 = arith.constant 0 : i32
    %c0_i32_0 = arith.constant 0 : i32
    %c0_i32_1 = arith.constant 0 : i32
    return %c0_i32, %c0_i32_0 : i32, i32
  }
  func.func @transform_4(%arg0: i32) -> i32 {
    %c0_i32 = arith.constant 0 : i32
    %c0_i32_0 = arith.constant 0 : i32
    return %c0_i32 : i32
  }
  func.func @transform_5(%arg0: i32) -> (i32, i32) {
    %c0_i32 = arith.constant 0 : i32
    %c0_i32_0 = arith.constant 0 : i32
    return %c0_i32, %arg0 : i32, i32
  }
}

</mosaic_0001>

<llo_original>
// kernel: tpu_custom_call.1
$region0: #{tpu_custom_call.1}
  #allocation0 [shape = 'u32[]', space=smem, size = 0x4, offset = 0x4, fixed_abs, tag = 'smem constant byte address 0x4 - core index']
  #allocation1 [shape = 'u32[72,128]{1,0:T(1,128)}', space=vmem, size = 0x9000, scoped, tag = 'internal scratch']
  %s0 = inlined_call_operand.vmem [shape: f32[3,128], index: 0, kind: input, shape index: {}]
  %s1 = inlined_call_operand.vmem [shape: f32[3,8], index: 1, kind: input, shape index: {}]
  %s2 = inlined_call_operand.vmem [shape: f32[8], index: 2, kind: input, shape index: {}]
  %s3 = inlined_call_operand.vmem [shape: f32[8,4], index: 3, kind: input, shape index: {}]
  %s4 = inlined_call_operand.vmem [shape: f32[4], index: 4, kind: input, shape index: {}]
  %s5 = inlined_call_operand.hbm [shape: f32[4,128], index: 5, kind: output, shape index: {}]
  %s6 = sld [smem:[#allocation0]]
  $region46: #{tpu_custom_call.1} parent=0
    _
  %s8 = ssub.s32 1, %s6
  %s9 = scalar_select 0, %s8, %s6
  $region1: #{tpu_custom_call.1} parent=0
    #allocation2 [shape = 'u8[2048]{0}', space=smem, size = 0x800, scoped, tag = 'input window, operand 1, single buffered']
    #allocation3 [shape = 's32[1]{0}', space=sflag, size = 0x4, scoped, tag = 'scoped memory for tpu_custom_call.1']
    #allocation4 [shape = 's32[1]{0}', space=sflag, size = 0x4, scoped, tag = 'scoped memory for tpu_custom_call.1']
    #allocation5 [shape = 'u8[512]{0}', space=smem, size = 0x200, scoped, tag = 'input window, operand 2, single buffered']
    #allocation6 [shape = 's32[1]{0}', space=sflag, size = 0x4, scoped, tag = 'scoped memory for tpu_custom_call.1']
    #allocation7 [shape = 'u8[4096]{0}', space=smem, size = 0x1000, scoped, tag = 'input window, operand 3, single buffered']
    #allocation8 [shape = 'u8[512]{0}', space=smem, size = 0x200, scoped, tag = 'input window, operand 4, single buffered']
    #allocation9 [shape = 's32[1]{0}', space=sflag, size = 0x4, scoped, tag = 'scoped memory for tpu_custom_call.1']
    #allocation10 [shape = 'u8[2048]{0}', space=vmem, size = 0x800, scoped, tag = 'output window, operand 0, single buffered']
    %10 = vsyncpa [#allocation4], 0
    %11 = vsyncpa [#allocation6], 0
    %12 = vsyncpa [#allocation9], 0
    %13 = vsyncpa [#allocation3], 0
    // Predicated region
    $region2: #{tpu_custom_call.1} parent=1 // pred_check
      _
    $region3: #{tpu_custom_call.1} parent=1 // pred_check_branch
      %15 = sbr.rel (0) target = $region5
    $region4: #{tpu_custom_call.1} parent=1 // pred_region
      _
    $region5: #{tpu_custom_call.1} parent=1 // pred_fallthru
      _
    // Predicated region
    $region6: #{tpu_custom_call.1} parent=1 // pred_check
      _
    $region7: #{tpu_custom_call.1} parent=1 // pred_check_branch
      %17 = sbr.rel (0) target = $region9
    $region8: #{tpu_custom_call.1} parent=1 // pred_region
      %19 = vsyncadd [#allocation4], 0
      %s21 = sshll.u32 %s1, 4
      %s22 = int_to_ptr.vmem [resolvable:$true] %s21
      %24 = dma.vmem_to_smem %s22, 64, [#allocation2], [#allocation4]
    $region9: #{tpu_custom_call.1} parent=1 // pred_fallthru
      _
    // Predicated region
    $region10: #{tpu_custom_call.1} parent=1 // pred_check
      _
    $region11: #{tpu_custom_call.1} parent=1 // pred_check_branch
      %26 = sbr.rel (0) target = $region13
    $region12: #{tpu_custom_call.1} parent=1 // pred_region
      %28 = vsyncadd [#allocation6], 0
      %s30 = sshll.u32 %s2, 4
      %s31 = int_to_ptr.vmem [resolvable:$true] %s30
      %33 = dma.vmem_to_smem %s31, 16, [#allocation5], [#allocation6]
    $region13: #{tpu_custom_call.1} parent=1 // pred_fallthru
      _
    // Predicated region
    $region14: #{tpu_custom_call.1} parent=1 // pred_check
      _
    $region15: #{tpu_custom_call.1} parent=1 // pred_check_branch
      %35 = sbr.rel (0) target = $region17
    $region16: #{tpu_custom_call.1} parent=1 // pred_region
      %37 = vsyncadd [#allocation6], 0
      %s39 = sshll.u32 %s3, 4
      %s40 = int_to_ptr.vmem [resolvable:$true] %s39
      %42 = dma.vmem_to_smem %s40, 128, [#allocation7], [#allocation6]
    $region17: #{tpu_custom_call.1} parent=1 // pred_fallthru
      _
    // Predicated region
    $region18: #{tpu_custom_call.1} parent=1 // pred_check
      _
    $region19: #{tpu_custom_call.1} parent=1 // pred_check_branch
      %44 = sbr.rel (0) target = $region21
    $region20: #{tpu_custom_call.1} parent=1 // pred_region
      %46 = vsyncadd [#allocation9], 0
      %s48 = sshll.u32 %s4, 4
      %s49 = int_to_ptr.vmem [resolvable:$true] %s48
      %51 = dma.vmem_to_smem %s49, 16, [#allocation8], [#allocation9]
    $region21: #{tpu_custom_call.1} parent=1 // pred_fallthru
      _
    // Predicated region
    $region22: #{tpu_custom_call.1} parent=1 // pred_check
      _
    $region23: #{tpu_custom_call.1} parent=1 // pred_check_branch
      %53 = sbr.rel (0) target = $region25
    $region24: #{tpu_custom_call.1} parent=1 // pred_region
      %55 = dma.done [#allocation4], 64
    $region25: #{tpu_custom_call.1} parent=1 // pred_fallthru
      _
    // Predicated region
    $region26: #{tpu_custom_call.1} parent=1 // pred_check
      _
    $region27: #{tpu_custom_call.1} parent=1 // pred_check_branch
      %57 = sbr.rel (0) target = $region29
    $region28: #{tpu_custom_call.1} parent=1 // pred_region
      %59 = dma.done [#allocation6], 16
    $region29: #{tpu_custom_call.1} parent=1 // pred_fallthru
      _
    // Predicated region
    $region30: #{tpu_custom_call.1} parent=1 // pred_check
      _
    $region31: #{tpu_custom_call.1} parent=1 // pred_check_branch
      %61 = sbr.rel (0) target = $region33
    $region32: #{tpu_custom_call.1} parent=1 // pred_region
      %63 = dma.done [#allocation6], 128
    $region33: #{tpu_custom_call.1} parent=1 // pred_fallthru
      _
    // Predicated region
    $region34: #{tpu_custom_call.1} parent=1 // pred_check
      _
    $region35: #{tpu_custom_call.1} parent=1 // pred_check_branch
      %65 = sbr.rel (0) target = $region37
    $region36: #{tpu_custom_call.1} parent=1 // pred_region
      %67 = dma.done [#allocation9], 16
    $region37: #{tpu_custom_call.1} parent=1 // pred_fallthru
      _
    %68 = sfence
    %v69 = vld [vmem:[%s0] sm:$0x7]
    %s70 = sld [smem:[#allocation2]]
    %v71 = vstv %s70
    %v72 = vmul.f32 %v69, %v71
    %s73 = sld [smem:[#allocation2 + $0x80]]
    %v74 = vstv %s73
    %v75 = vmul.f32 %v69, %v74
    %v77 = vrot.slane %v75, 1
    %v79 = vadd.f32 %v72, %v77
    %s80 = sld [smem:[#allocation2 + $0x100]]
    %v81 = vstv %s80
    %v82 = vmul.f32 %v69, %v81
    %v84 = vrot.slane %v82, 2
    %v86 = vadd.f32 %v79, %v84
    %s87 = sld [smem:[#allocation5]]
    %v88 = vstv %s87
    %v89 = vadd.f32 %v86, %v88
    %v90 = vtanh.pop %v89
    %s91 = sld [smem:[#allocation2 + $0x1]]
    %v92 = vstv %s91
    %v93 = vmul.f32 %v69, %v92
    %s94 = sld [smem:[#allocation2 + $0x81]]
    %v95 = vstv %s94
    %v96 = vmul.f32 %v69, %v95
    %v98 = vrot.slane %v96, 1
    %v100 = vadd.f32 %v93, %v98
    %s101 = sld [smem:[#allocation2 + $0x101]]
    %v102 = vstv %s101
    %v103 = vmul.f32 %v69, %v102
    %v105 = vrot.slane %v103, 2
    %v107 = vadd.f32 %v100, %v105
    %s108 = sld [smem:[#allocation5 + $0x1]]
    %v109 = vstv %s108
    %v110 = vadd.f32 %v107, %v109
    %v111 = vtanh.pop %v110
    %s112 = sld [smem:[#allocation2 + $0x2]]
    %v113 = vstv %s112
    %v114 = vmul.f32 %v69, %v113
    %s115 = sld [smem:[#allocation2 + $0x82]]
    %v116 = vstv %s115
    %v117 = vmul.f32 %v69, %v116
    %v119 = vrot.slane %v117, 1
    %v121 = vadd.f32 %v114, %v119
    %s122 = sld [smem:[#allocation2 + $0x102]]
    %v123 = vstv %s122
    %v124 = vmul.f32 %v69, %v123
    %v126 = vrot.slane %v124, 2
    %v128 = vadd.f32 %v121, %v126
    %s129 = sld [smem:[#allocation5 + $0x2]]
    %v130 = vstv %s129
    %v131 = vadd.f32 %v128, %v130
    %v132 = vtanh.pop %v131
    %s133 = sld [smem:[#allocation2 + $0x3]]
    %v134 = vstv %s133
    %v135 = vmul.f32 %v69, %v134
    %s136 = sld [smem:[#allocation2 + $0x83]]
    %v137 = vstv %s136
    %v138 = vmul.f32 %v69, %v137
    %v140 = vrot.slane %v138, 1
    %v142 = vadd.f32 %v135, %v140
    %s143 = sld [smem:[#allocation2 + $0x103]]
    %v144 = vstv %s143
    %v145 = vmul.f32 %v69, %v144
    %v147 = vrot.slane %v145, 2
    %v149 = vadd.f32 %v142, %v147
    %s150 = sld [smem:[#allocation5 + $0x3]]
    %v151 = vstv %s150
    %v152 = vadd.f32 %v149, %v151
    %v153 = vtanh.pop %v152
    %s154 = sld [smem:[#allocation2 + $0x4]]
    %v155 = vstv %s154
    %v156 = vmul.f32 %v69, %v155
    %s157 = sld [smem:[#allocation2 + $0x84]]
    %v158 = vstv %s157
    %v159 = vmul.f32 %v69, %v158
    %v161 = vrot.slane %v159, 1
    %v163 = vadd.f32 %v156, %v161
    %s164 = sld [smem:[#allocation2 + $0x104]]
    %v165 = vstv %s164
    %v166 = vmul.f32 %v69, %v165
    %v168 = vrot.slane %v166, 2
    %v170 = vadd.f32 %v163, %v168
    %s171 = sld [smem:[#allocation5 + $0x4]]
    %v172 = vstv %s171
    %v173 = vadd.f32 %v170, %v172
    %v174 = vtanh.pop %v173
    %s175 = sld [smem:[#allocation2 + $0x5]]
    %v176 = vstv %s175
    %v177 = vmul.f32 %v69, %v176
    %s178 = sld [smem:[#allocation2 + $0x85]]
    %v179 = vstv %s178
    %v180 = vmul.f32 %v69, %v179
    %v182 = vrot.slane %v180, 1
    %v184 = vadd.f32 %v177, %v182
    %s185 = sld [smem:[#allocation2 + $0x105]]
    %v186 = vstv %s185
    %v187 = vmul.f32 %v69, %v186
    %v189 = vrot.slane %v187, 2
    %v191 = vadd.f32 %v184, %v189
    %s192 = sld [smem:[#allocation5 + $0x5]]
    %v193 = vstv %s192
    %v194 = vadd.f32 %v191, %v193
    %v195 = vtanh.pop %v194
    %s196 = sld [smem:[#allocation2 + $0x6]]
    %v197 = vstv %s196
    %v198 = vmul.f32 %v69, %v197
    %s199 = sld [smem:[#allocation2 + $0x86]]
    %v200 = vstv %s199
    %v201 = vmul.f32 %v69, %v200
    %v203 = vrot.slane %v201, 1
    %v205 = vadd.f32 %v198, %v203
    %s206 = sld [smem:[#allocation2 + $0x106]]
    %v207 = vstv %s206
    %v208 = vmul.f32 %v69, %v207
    %v210 = vrot.slane %v208, 2
    %v212 = vadd.f32 %v205, %v210
    %s213 = sld [smem:[#allocation5 + $0x6]]
    %v214 = vstv %s213
    %v215 = vadd.f32 %v212, %v214
    %v216 = vtanh.pop %v215
    %s217 = sld [smem:[#allocation2 + $0x7]]
    %v218 = vstv %s217
    %v219 = vmul.f32 %v69, %v218
    %s220 = sld [smem:[#allocation2 + $0x87]]
    %v221 = vstv %s220
    %v222 = vmul.f32 %v69, %v221
    %v224 = vrot.slane %v222, 1
    %v226 = vadd.f32 %v219, %v224
    %s227 = sld [smem:[#allocation2 + $0x107]]
    %v228 = vstv %s227
    %v229 = vmul.f32 %v69, %v228
    %v231 = vrot.slane %v229, 2
    %v233 = vadd.f32 %v226, %v231
    %s234 = sld [smem:[#allocation5 + $0x7]]
    %v235 = vstv %s234
    %v236 = vadd.f32 %v233, %v235
    %v237 = vtanh.pop %v236
    %s238 = sld [smem:[#allocation7]]
    %v239 = vstv %s238
    %v240 = vmul.f32 %v90, %v239
    %s241 = sld [smem:[#allocation7 + $0x80]]
    %v242 = vstv %s241
    %v243 = vmul.f32 %v111, %v242
    %v244 = vadd.f32 %v240, %v243
    %s245 = sld [smem:[#allocation7 + $0x100]]
    %v246 = vstv %s245
    %v247 = vmul.f32 %v132, %v246
    %v248 = vadd.f32 %v244, %v247
    %s249 = sld [smem:[#allocation7 + $0x180]]
    %v250 = vstv %s249
    %v251 = vmul.f32 %v153, %v250
    %v252 = vadd.f32 %v248, %v251
    %s253 = sld [smem:[#allocation7 + $0x200]]
    %v254 = vstv %s253
    %v255 = vmul.f32 %v174, %v254
    %v256 = vadd.f32 %v252, %v255
    %s257 = sld [smem:[#allocation7 + $0x280]]
    %v258 = vstv %s257
    %v259 = vmul.f32 %v195, %v258
    %v260 = vadd.f32 %v256, %v259
    %s261 = sld [smem:[#allocation7 + $0x300]]
    %v262 = vstv %s261
    %v263 = vmul.f32 %v216, %v262
    %v264 = vadd.f32 %v260, %v263
    %s265 = sld [smem:[#allocation7 + $0x380]]
    %v266 = vstv %s265
    %v267 = vmul.f32 %v237, %v266
    %v268 = vadd.f32 %v264, %v267
    %s269 = sld [smem:[#allocation8]]
    %v270 = vstv %s269
    %v271 = vadd.f32 %v268, %v270
    %s272 = sld [smem:[#allocation7 + $0x1]]
    %v273 = vstv %s272
    %v274 = vmul.f32 %v90, %v273
    %s275 = sld [smem:[#allocation7 + $0x81]]
    %v276 = vstv %s275
    %v277 = vmul.f32 %v111, %v276
    %v278 = vadd.f32 %v274, %v277
    %s279 = sld [smem:[#allocation7 + $0x101]]
    %v280 = vstv %s279
    %v281 = vmul.f32 %v132, %v280
    %v282 = vadd.f32 %v278, %v281
    %s283 = sld [smem:[#allocation7 + $0x181]]
    %v284 = vstv %s283
    %v285 = vmul.f32 %v153, %v284
    %v286 = vadd.f32 %v282, %v285
    %s287 = sld [smem:[#allocation7 + $0x201]]
    %v288 = vstv %s287
    %v289 = vmul.f32 %v174, %v288
    %v290 = vadd.f32 %v286, %v289
    %s291 = sld [smem:[#allocation7 + $0x281]]
    %v292 = vstv %s291
    %v293 = vmul.f32 %v195, %v292
    %v294 = vadd.f32 %v290, %v293
    %s295 = sld [smem:[#allocation7 + $0x301]]
    %v296 = vstv %s295
    %v297 = vmul.f32 %v216, %v296
    %v298 = vadd.f32 %v294, %v297
    %s299 = sld [smem:[#allocation7 + $0x381]]
    %v300 = vstv %s299
    %v301 = vmul.f32 %v237, %v300
    %v302 = vadd.f32 %v298, %v301
    %s303 = sld [smem:[#allocation8 + $0x1]]
    %v304 = vstv %s303
    %v305 = vadd.f32 %v302, %v304
    %s306 = sld [smem:[#allocation7 + $0x2]]
    %v307 = vstv %s306
    %v308 = vmul.f32 %v90, %v307
    %s309 = sld [smem:[#allocation7 + $0x82]]
    %v310 = vstv %s309
    %v311 = vmul.f32 %v111, %v310
    %v312 = vadd.f32 %v308, %v311
    %s313 = sld [smem:[#allocation7 + $0x102]]
    %v314 = vstv %s313
    %v315 = vmul.f32 %v132, %v314
    %v316 = vadd.f32 %v312, %v315
    %s317 = sld [smem:[#allocation7 + $0x182]]
    %v318 = vstv %s317
    %v319 = vmul.f32 %v153, %v318
    %v320 = vadd.f32 %v316, %v319
    %s321 = sld [smem:[#allocation7 + $0x202]]
    %v322 = vstv %s321
    %v323 = vmul.f32 %v174, %v322
    %v324 = vadd.f32 %v320, %v323
    %s325 = sld [smem:[#allocation7 + $0x282]]
    %v326 = vstv %s325
    %v327 = vmul.f32 %v195, %v326
    %v328 = vadd.f32 %v324, %v327
    %s329 = sld [smem:[#allocation7 + $0x302]]
    %v330 = vstv %s329
    %v331 = vmul.f32 %v216, %v330
    %v332 = vadd.f32 %v328, %v331
    %s333 = sld [smem:[#allocation7 + $0x382]]
    %v334 = vstv %s333
    %v335 = vmul.f32 %v237, %v334
    %v336 = vadd.f32 %v332, %v335
    %s337 = sld [smem:[#allocation8 + $0x2]]
    %v338 = vstv %s337
    %v339 = vadd.f32 %v336, %v338
    %s340 = sld [smem:[#allocation7 + $0x3]]
    %v341 = vstv %s340
    %v342 = vmul.f32 %v90, %v341
    %s343 = sld [smem:[#allocation7 + $0x83]]
    %v344 = vstv %s343
    %v345 = vmul.f32 %v111, %v344
    %v346 = vadd.f32 %v342, %v345
    %s347 = sld [smem:[#allocation7 + $0x103]]
    %v348 = vstv %s347
    %v349 = vmul.f32 %v132, %v348
    %v350 = vadd.f32 %v346, %v349
    %s351 = sld [smem:[#allocation7 + $0x183]]
    %v352 = vstv %s351
    %v353 = vmul.f32 %v153, %v352
    %v354 = vadd.f32 %v350, %v353
    %s355 = sld [smem:[#allocation7 + $0x203]]
    %v356 = vstv %s355
    %v357 = vmul.f32 %v174, %v356
    %v358 = vadd.f32 %v354, %v357
    %s359 = sld [smem:[#allocation7 + $0x283]]
    %v360 = vstv %s359
    %v361 = vmul.f32 %v195, %v360
    %v362 = vadd.f32 %v358, %v361
    %s363 = sld [smem:[#allocation7 + $0x303]]
    %v364 = vstv %s363
    %v365 = vmul.f32 %v216, %v364
    %v366 = vadd.f32 %v362, %v365
    %s367 = sld [smem:[#allocation7 + $0x383]]
    %v368 = vstv %s367
    %v369 = vmul.f32 %v237, %v368
    %v370 = vadd.f32 %v366, %v369
    %s371 = sld [smem:[#allocation8 + $0x3]]
    %v372 = vstv %s371
    %v373 = vadd.f32 %v370, %v372
    %v374 = vmax.f32 %v271, %v305
    %v375 = vmax.f32 %v374, %v339
    %v376 = vmax.f32 %v375, %v373
    %v377 = vsub.f32 %v271, %v376
    %v378 = vmul.f32 %v377, 1.442695
    %v379 = vpow.pop %v378
    %v380 = vsub.f32 %v305, %v376
    %v381 = vmul.f32 %v380, 1.442695
    %v382 = vpow.pop %v381
    %v383 = vsub.f32 %v339, %v376
    %v384 = vmul.f32 %v383, 1.442695
    %v385 = vpow.pop %v384
    %v386 = vsub.f32 %v373, %v376
    %v387 = vmul.f32 %v386, 1.442695
    %v388 = vpow.pop %v387
    %v389 = vadd.f32 %v379, %v382
    %v390 = vadd.f32 %v389, %v385
    %v391 = vadd.f32 %v390, %v388
    %v392 = vrcp.pop %v391
    %v393 = vmul.f32 %v391, %v392
    %v394 = vsub.f32 1.0, %v393
    %v395 = vmul.f32 %v392, %v394
    %v396 = vadd.f32 %v392, %v395
    %vm397 = vweird.f32 %v391
    %vm398 = vweird.f32 %v392
    %vm399 = vmor %vm397, %vm398
    %v400 = vsel %vm399, %v392, %v396
    %v401 = vand.u32 2147483647, %v391
    %vm402 = vcmp.eq.f32.partialorder %v401, 8.507059e+37
    %v403 = vand.u32 %v391, 2147483648
    %v404 = vor.u32 1.1754944e-38, %v403
    %v405 = vsel %vm402, %v404, %v400
    %v406 = vmul.f32 1.0, %v405
    %v408 = vrot.slane %v382, 7
    %v411 = vrot.slane %v385, 6
    %v414 = vrot.slane %v388, 5
    %vm416 = vcmask 1040384
    %v417 = vsel %vm416, %v379, %v408
    %vm418 = vcmask 1041408
    %v419 = vsel %vm418, %v417, %v411
    %vm420 = vcmask 1042432
    %v421 = vsel %vm420, %v419, %v414
    %v422 = vperm.slane %v406, 0
    %v423 = vmul.f32 %v421, %v422
    %424 = vst [vmem:[#allocation10] sm:$0xf] %v423
    // Predicated region
    $region38: #{tpu_custom_call.1} parent=1 // pred_check
      _
    $region39: #{tpu_custom_call.1} parent=1 // pred_check_branch
      %426 = sbr.rel (0) target = $region41
    $region40: #{tpu_custom_call.1} parent=1 // pred_region
      %428 = vsyncadd [#allocation3], 0
      %s430 = sshll.u32 [#allocation10], 4
      %s431 = int_to_ptr.vmem [resolvable:$true] %s430
      %s432 = sshll.u32 %s5, 4
      %s433 = int_to_ptr.hbm [resolvable:$true] %s432
      %435 = dma.vmem_to_hbm [thread:$0]  %s431, 64, %s433, [#allocation3]
    $region41: #{tpu_custom_call.1} parent=1 // pred_fallthru
      _
    // Predicated region
    $region42: #{tpu_custom_call.1} parent=1 // pred_check
      _
    $region43: #{tpu_custom_call.1} parent=1 // pred_check_branch
      %437 = sbr.rel (0) target = $region45
    $region44: #{tpu_custom_call.1} parent=1 // pred_region
      %439 = dma.done [#allocation3], 64
    $region45: #{tpu_custom_call.1} parent=1 // pred_fallthru
      _
    %440 = vsyncpa [#allocation3], 1
    %441 = vsyncpa [#allocation4], 1
    %442 = vsyncpa [#allocation6], 1
    %443 = vsyncpa [#allocation9], 1

</llo_original>
